<compile_context>
chip_gen: v5e
topology: v5e:2x2
jax: 0.10.0
libtpu: 0.0.40
codegen_flags: <defaults>
</compile_context>

<pallas_src>
import jax
import jax.numpy as jnp
from jax.experimental import pallas as pl
from jax.experimental.pallas import tpu as pltpu


def _round_up(n, m):
    return ((n + m - 1) // m) * m


def qnetwork_kernel(x_ref, w1_ref, b1_ref, w2_ref, b2_ref, w3_ref, b3_ref, out_ref):
    tb, s = x_ref.shape          # (TILE_B, state_size)
    f1 = w1_ref.shape[1]         # fc1_units

    x = x_ref[...]               # f32 (TILE_B, S)
    w1 = w1_ref[...]             # f32 (S, F1)

    # --- fc1 on the VPU: K = state_size (8) would waste the MXU, so unroll it as
    # S broadcast-FMA accumulations in f32 (frees the MXU push slot entirely).
    h1 = jnp.broadcast_to(b1_ref[...], (tb, f1))
    for k in range(s):  # static unroll (S is small)
        h1 = h1 + x[:, k:k + 1] * w1[k:k + 1, :]
    h1 = jnp.maximum(h1, 0.0)                      # f32 ReLU (VPU)

    # --- fc2: MXU dot with bf16 operands, f32 accumulate; epilogue stays f32.
    h2 = jnp.dot(h1.astype(w2_ref.dtype), w2_ref[...],
                 preferred_element_type=jnp.float32) + b2_ref[...]
    h2 = jnp.maximum(h2, 0.0)

    # --- fc3: MXU dot with bf16 operands, f32 accumulate.  Output columns are
    # zero-padded to 128 so the store below is lane-dense (unmasked vst).
    out = jnp.dot(h2.astype(w3_ref.dtype), w3_ref[...],
                  preferred_element_type=jnp.float32) + b3_ref[...]
    out_ref[...] = out.astype(out_ref.dtype)


def qnetwork_forward(x, params, *, tile_b=None):
    """x: [batch, state_size] float32. params: dict of w1,b1,w2,b2,w3,b3 (f32)."""
    w1, b1 = params["w1"], params["b1"]
    w2, b2 = params["w2"], params["b2"]
    w3, b3 = params["w3"], params["b3"]

    batch, state_size = x.shape
    f1 = w1.shape[1]
    f2 = w2.shape[1]
    f3 = w3.shape[1]

    # Lane-dense output: pad fc3 columns up to a multiple of 128.
    f3p = _round_up(max(f3, 128), 128)
    w3p = jnp.pad(w3, ((0, 0), (0, f3p - f3))).astype(jnp.bfloat16)
    b3p = jnp.pad(b3, ((0, 0), (0, f3p - f3)))

    # bf16 operands for the MXU dots (f32 accumulation inside the kernel).
    w2c = w2.astype(jnp.bfloat16)

    # Batch tiling.  Per-tile VMEM footprint is tiny (x: TILE_B*8, h1: TILE_B*128,
    # out: TILE_B*128 in f32), so TILE_B can be raised well past 256 on any
    # generation (including v7x's 64 MiB VMEM) if batches get large.
    if tile_b is None:
        tile_b = min(256, _round_up(batch, 8))
    padded_batch = _round_up(batch, tile_b)
    n_tiles = padded_batch // tile_b
    if padded_batch != batch:
        x = jnp.pad(x, ((0, padded_batch - batch), (0, 0)))

    # Advisory cost estimate for XLA's scheduler.
    flops = 2 * padded_batch * (state_size * f1 + f1 * f2 + f2 * f3p)
    bytes_accessed = (w1.size * 4 + b1.size * 4 + w2c.size * 2 + b2.size * 4
                      + w3p.size * 2 + b3p.size * 4
                      + padded_batch * (state_size + f3p) * 4)

    # Weights/biases: full-block, same block every grid step -> stay resident.
    resident = lambda shape: pl.BlockSpec(shape, lambda i: (0, 0))

    out_padded = pl.pallas_call(
        qnetwork_kernel,
        out_shape=jax.ShapeDtypeStruct((padded_batch, f3p), jnp.float32),
        grid_spec=pltpu.PrefetchScalarGridSpec(
            num_scalar_prefetch=0,
            grid=(n_tiles,),
            in_specs=[
                pl.BlockSpec((tile_b, state_size), lambda i: (i, 0)),  # x tile
                resident(w1.shape), resident(b1.shape),                # fc1 (f32, VPU path)
                resident(w2c.shape), resident(b2.shape),               # fc2 (bf16 W, f32 b)
                resident(w3p.shape), resident(b3p.shape),              # fc3 (bf16 W, f32 b, padded)
            ],
            out_specs=pl.BlockSpec((tile_b, f3p), lambda i: (i, 0)),
        ),
        compiler_params=pltpu.CompilerParams(
            dimension_semantics=("parallel",)),
        cost_estimate=pl.CostEstimate(
            flops=flops, transcendentals=0, bytes_accessed=bytes_accessed),
    )(x, w1, b1, w2c, b2, w3p, b3p)

    # Slice away batch padding and the lane-padding columns.
    return out_padded[:batch, :f3]


def init_params(key, state_size, action_size, fc1_units=128, fc2_units=64, fc3_units=64):
    """Deterministic init mimicking nn.Linear default (U[-1/sqrt(fan_in), 1/sqrt(fan_in)]).

    Weights are stored as [in, out] (transpose of PyTorch's [out, in]).
    fc4 exists in __init__ but is unused by forward(); we skip allocating it.
    """
    def linear(key, fan_in, fan_out):
        kw, kb = jax.random.split(key)
        bound = 1.0 / jnp.sqrt(jnp.float32(fan_in))
        w = jax.random.uniform(kw, (fan_in, fan_out), jnp.float32, -bound, bound)
        b = jax.random.uniform(kb, (1, fan_out), jnp.float32, -bound, bound)
        return w, b

    k1, k2, k3 = jax.random.split(key, 3)
    w1, b1 = linear(k1, state_size, fc1_units)
    w2, b2 = linear(k2, fc1_units, fc2_units)
    w3, b3 = linear(k3, fc2_units, fc3_units)
    return {"w1": w1, "b1": b1, "w2": w2, "b2": b2, "w3": w3, "b3": b3}


if __name__ == "__main__":
    state_size = 8
    action_size = 4   # fc4 (unused in forward) would map fc3_units -> action_size
    batch = 2         # NOTE: at batch=2 this call is launch-overhead bound; the
                      # kernel's tiling/bf16 wins only show up at large batches.

    key = jax.random.PRNGKey(0)
    kx, kp = jax.random.split(key)

    x = jax.random.normal(kx, (batch, state_size), dtype=jnp.float32)
    params = init_params(kp, state_size, action_size)

    out = qnetwork_forward(x, params)
    out = jax.block_until_ready(out)
    assert out.shape == (batch, 64), out.shape

    # Matched-precision reference (bf16 matmul operands, f32 accumulation).
    bf16 = jnp.bfloat16
    h1 = jnp.maximum(x @ params["w1"] + params["b1"], 0.0)
    h2 = jnp.maximum(
        jnp.dot(h1.astype(bf16), params["w2"].astype(bf16),
                preferred_element_type=jnp.float32) + params["b2"], 0.0)
    ref = jnp.dot(h2.astype(bf16), params["w3"].astype(bf16),
                  preferred_element_type=jnp.float32) + params["b3"]
    assert jnp.allclose(out, ref, atol=1e-2, rtol=1e-2), \
        float(jnp.max(jnp.abs(out - ref)))

    # Loose sanity check against the pure-f32 reference (bf16 => ~1e-2 deviation).
    h1f = jnp.maximum(x @ params["w1"] + params["b1"], 0.0)
    h2f = jnp.maximum(h1f @ params["w2"] + params["b2"], 0.0)
    reff = h2f @ params["w3"] + params["b3"]
    assert jnp.allclose(out, reff, atol=5e-2, rtol=5e-2)

    print("KERNEL_OK")
</pallas_src>

<mosaic_0001>
module attributes {stable_mosaic.version = 11 : i64} {
  func.func @qnetwork_kernel(%arg0: i32, %arg1: memref<8x8xf32, #tpu.memory_space<vmem>>, %arg2: memref<8x128xf32, #tpu.memory_space<vmem>>, %arg3: memref<1x128xf32, #tpu.memory_space<vmem>>, %arg4: memref<128x64xbf16, #tpu.memory_space<vmem>>, %arg5: memref<1x64xf32, #tpu.memory_space<vmem>>, %arg6: memref<64x128xbf16, #tpu.memory_space<vmem>>, %arg7: memref<1x128xf32, #tpu.memory_space<vmem>>, %arg8: memref<8x128xf32, #tpu.memory_space<vmem>>) attributes {dimension_semantics = [#tpu.dimension_semantics<parallel>], iteration_bounds = array<i64: 1>, scalar_prefetch = 0 : i64, scratch_operands = 0 : i64, tpu.core_type = #tpu.core_type<tc>, window_params = [{transform_indices = @transform_0, window_bounds = array<i64: 8, 8>}, {pipeline_mode = #tpu.pipeline_mode<synchronous>, transform_indices = @transform_1, window_bounds = array<i64: 8, 128>}, {pipeline_mode = #tpu.pipeline_mode<synchronous>, transform_indices = @transform_2, window_bounds = array<i64: 1, 128>}, {pipeline_mode = #tpu.pipeline_mode<synchronous>, transform_indices = @transform_3, window_bounds = array<i64: 128, 64>}, {pipeline_mode = #tpu.pipeline_mode<synchronous>, transform_indices = @transform_4, window_bounds = array<i64: 1, 64>}, {pipeline_mode = #tpu.pipeline_mode<synchronous>, transform_indices = @transform_5, window_bounds = array<i64: 64, 128>}, {pipeline_mode = #tpu.pipeline_mode<synchronous>, transform_indices = @transform_6, window_bounds = array<i64: 1, 128>}, {transform_indices = @transform_7, window_bounds = array<i64: 8, 128>}]} {
    %c0 = arith.constant 0 : index
    %c0_0 = arith.constant 0 : index
    %0 = vector.load %arg1[%c0, %c0_0] : memref<8x8xf32, #tpu.memory_space<vmem>>, vector<8x8xf32>
    %c0_1 = arith.constant 0 : index
    %c0_2 = arith.constant 0 : index
    %1 = vector.load %arg2[%c0_1, %c0_2] : memref<8x128xf32, #tpu.memory_space<vmem>>, vector<8x128xf32>
    %c0_3 = arith.constant 0 : index
    %c0_4 = arith.constant 0 : index
    %2 = vector.load %arg3[%c0_3, %c0_4] : memref<1x128xf32, #tpu.memory_space<vmem>>, vector<1x128xf32>
    %3 = vector.shape_cast %2 : vector<1x128xf32> to vector<1x128xf32>
    %4 = vector.broadcast %3 : vector<1x128xf32> to vector<8x128xf32>
    %5 = vector.extract_strided_slice %0 {offsets = [0, 0], sizes = [8, 1], strides = [1, 1]} : vector<8x8xf32> to vector<8x1xf32>
    %6 = vector.extract_strided_slice %1 {offsets = [0, 0], sizes = [1, 128], strides = [1, 1]} : vector<8x128xf32> to vector<1x128xf32>
    %7 = vector.broadcast %5 : vector<8x1xf32> to vector<8x128xf32>
    %8 = vector.broadcast %6 : vector<1x128xf32> to vector<8x128xf32>
    %9 = arith.mulf %7, %8 : vector<8x128xf32>
    %10 = arith.addf %4, %9 : vector<8x128xf32>
    %11 = vector.extract_strided_slice %0 {offsets = [0, 1], sizes = [8, 1], strides = [1, 1]} : vector<8x8xf32> to vector<8x1xf32>
    %12 = vector.extract_strided_slice %1 {offsets = [1, 0], sizes = [1, 128], strides = [1, 1]} : vector<8x128xf32> to vector<1x128xf32>
    %13 = vector.broadcast %11 : vector<8x1xf32> to vector<8x128xf32>
    %14 = vector.broadcast %12 : vector<1x128xf32> to vector<8x128xf32>
    %15 = arith.mulf %13, %14 : vector<8x128xf32>
    %16 = arith.addf %10, %15 : vector<8x128xf32>
    %17 = vector.extract_strided_slice %0 {offsets = [0, 2], sizes = [8, 1], strides = [1, 1]} : vector<8x8xf32> to vector<8x1xf32>
    %18 = vector.extract_strided_slice %1 {offsets = [2, 0], sizes = [1, 128], strides = [1, 1]} : vector<8x128xf32> to vector<1x128xf32>
    %19 = vector.broadcast %17 : vector<8x1xf32> to vector<8x128xf32>
    %20 = vector.broadcast %18 : vector<1x128xf32> to vector<8x128xf32>
    %21 = arith.mulf %19, %20 : vector<8x128xf32>
    %22 = arith.addf %16, %21 : vector<8x128xf32>
    %23 = vector.extract_strided_slice %0 {offsets = [0, 3], sizes = [8, 1], strides = [1, 1]} : vector<8x8xf32> to vector<8x1xf32>
    %24 = vector.extract_strided_slice %1 {offsets = [3, 0], sizes = [1, 128], strides = [1, 1]} : vector<8x128xf32> to vector<1x128xf32>
    %25 = vector.broadcast %23 : vector<8x1xf32> to vector<8x128xf32>
    %26 = vector.broadcast %24 : vector<1x128xf32> to vector<8x128xf32>
    %27 = arith.mulf %25, %26 : vector<8x128xf32>
    %28 = arith.addf %22, %27 : vector<8x128xf32>
    %29 = vector.extract_strided_slice %0 {offsets = [0, 4], sizes = [8, 1], strides = [1, 1]} : vector<8x8xf32> to vector<8x1xf32>
    %30 = vector.extract_strided_slice %1 {offsets = [4, 0], sizes = [1, 128], strides = [1, 1]} : vector<8x128xf32> to vector<1x128xf32>
    %31 = vector.broadcast %29 : vector<8x1xf32> to vector<8x128xf32>
    %32 = vector.broadcast %30 : vector<1x128xf32> to vector<8x128xf32>
    %33 = arith.mulf %31, %32 : vector<8x128xf32>
    %34 = arith.addf %28, %33 : vector<8x128xf32>
    %35 = vector.extract_strided_slice %0 {offsets = [0, 5], sizes = [8, 1], strides = [1, 1]} : vector<8x8xf32> to vector<8x1xf32>
    %36 = vector.extract_strided_slice %1 {offsets = [5, 0], sizes = [1, 128], strides = [1, 1]} : vector<8x128xf32> to vector<1x128xf32>
    %37 = vector.broadcast %35 : vector<8x1xf32> to vector<8x128xf32>
    %38 = vector.broadcast %36 : vector<1x128xf32> to vector<8x128xf32>
    %39 = arith.mulf %37, %38 : vector<8x128xf32>
    %40 = arith.addf %34, %39 : vector<8x128xf32>
    %41 = vector.extract_strided_slice %0 {offsets = [0, 6], sizes = [8, 1], strides = [1, 1]} : vector<8x8xf32> to vector<8x1xf32>
    %42 = vector.extract_strided_slice %1 {offsets = [6, 0], sizes = [1, 128], strides = [1, 1]} : vector<8x128xf32> to vector<1x128xf32>
    %43 = vector.broadcast %41 : vector<8x1xf32> to vector<8x128xf32>
    %44 = vector.broadcast %42 : vector<1x128xf32> to vector<8x128xf32>
    %45 = arith.mulf %43, %44 : vector<8x128xf32>
    %46 = arith.addf %40, %45 : vector<8x128xf32>
    %47 = vector.extract_strided_slice %0 {offsets = [0, 7], sizes = [8, 1], strides = [1, 1]} : vector<8x8xf32> to vector<8x1xf32>
    %48 = vector.extract_strided_slice %1 {offsets = [7, 0], sizes = [1, 128], strides = [1, 1]} : vector<8x128xf32> to vector<1x128xf32>
    %49 = vector.broadcast %47 : vector<8x1xf32> to vector<8x128xf32>
    %50 = vector.broadcast %48 : vector<1x128xf32> to vector<8x128xf32>
    %51 = arith.mulf %49, %50 : vector<8x128xf32>
    %52 = arith.addf %46, %51 : vector<8x128xf32>
    %cst = arith.constant 0.000000e+00 : f32
    %53 = vector.broadcast %cst : f32 to vector<8x128xf32>
    %54 = arith.maximumf %52, %53 : vector<8x128xf32>
    %55 = arith.truncf %54 : vector<8x128xf32> to vector<8x128xbf16>
    %c0_5 = arith.constant 0 : index
    %c0_6 = arith.constant 0 : index
    %56 = vector.load %arg4[%c0_5, %c0_6] : memref<128x64xbf16, #tpu.memory_space<vmem>>, vector<128x64xbf16>
    %cst_7 = arith.constant dense<0.000000e+00> : vector<8x64xf32>
    %57 = tpu.matmul %55, %56, %cst_7 {dimension_numbers = #tpu.dot_dimension_numbers<[1], [0], [0], [1], [0, 0, 1, 1], [], []>} : vector<8x128xbf16>, vector<128x64xbf16>, vector<8x64xf32> -> vector<8x64xf32>
    %c0_8 = arith.constant 0 : index
    %c0_9 = arith.constant 0 : index
    %58 = vector.load %arg5[%c0_8, %c0_9] : memref<1x64xf32, #tpu.memory_space<vmem>>, vector<1x64xf32>
    %59 = vector.broadcast %58 : vector<1x64xf32> to vector<8x64xf32>
    %60 = arith.addf %57, %59 : vector<8x64xf32>
    %cst_10 = arith.constant 0.000000e+00 : f32
    %61 = vector.broadcast %cst_10 : f32 to vector<8x64xf32>
    %62 = arith.maximumf %60, %61 : vector<8x64xf32>
    %63 = arith.truncf %62 : vector<8x64xf32> to vector<8x64xbf16>
    %c0_11 = arith.constant 0 : index
    %c0_12 = arith.constant 0 : index
    %64 = vector.load %arg6[%c0_11, %c0_12] : memref<64x128xbf16, #tpu.memory_space<vmem>>, vector<64x128xbf16>
    %cst_13 = arith.constant dense<0.000000e+00> : vector<8x128xf32>
    %65 = tpu.matmul %63, %64, %cst_13 {dimension_numbers = #tpu.dot_dimension_numbers<[1], [0], [0], [1], [0, 0, 1, 1], [], []>} : vector<8x64xbf16>, vector<64x128xbf16>, vector<8x128xf32> -> vector<8x128xf32>
    %c0_14 = arith.constant 0 : index
    %c0_15 = arith.constant 0 : index
    %66 = vector.load %arg7[%c0_14, %c0_15] : memref<1x128xf32, #tpu.memory_space<vmem>>, vector<1x128xf32>
    %67 = vector.broadcast %66 : vector<1x128xf32> to vector<8x128xf32>
    %68 = arith.addf %65, %67 : vector<8x128xf32>
    %c0_16 = arith.constant 0 : index
    %c0_17 = arith.constant 0 : index
    %69 = vector.load %arg8[%c0_16, %c0_17] : memref<8x128xf32, #tpu.memory_space<vmem>>, vector<8x128xf32>
    tpu.vector_store %arg8[%c0_16, %c0_17], %68 {strides = array<i32>} : memref<8x128xf32, #tpu.memory_space<vmem>>, vector<8x128xf32>,
    return
  }
  func.func @transform_0(%arg0: i32) -> (i32, i32) {
    %c0_i32 = arith.constant 0 : i32
    %c0_i32_0 = arith.constant 0 : i32
    return %arg0, %c0_i32 : i32, i32
  }
  func.func @transform_1(%arg0: i32) -> (i32, i32) {
    %c0_i32 = arith.constant 0 : i32
    %c0_i32_0 = arith.constant 0 : i32
    %c0_i32_1 = arith.constant 0 : i32
    return %c0_i32, %c0_i32_0 : i32, i32
  }
  func.func @transform_2(%arg0: i32) -> (i32, i32) {
    %c0_i32 = arith.constant 0 : i32
    %c0_i32_0 = arith.constant 0 : i32
    %c0_i32_1 = arith.constant 0 : i32
    return %c0_i32, %c0_i32_0 : i32, i32
  }
  func.func @transform_3(%arg0: i32) -> (i32, i32) {
    %c0_i32 = arith.constant 0 : i32
    %c0_i32_0 = arith.constant 0 : i32
    %c0_i32_1 = arith.constant 0 : i32
    return %c0_i32, %c0_i32_0 : i32, i32
  }
  func.func @transform_4(%arg0: i32) -> (i32, i32) {
    %c0_i32 = arith.constant 0 : i32
    %c0_i32_0 = arith.constant 0 : i32
    %c0_i32_1 = arith.constant 0 : i32
    return %c0_i32, %c0_i32_0 : i32, i32
  }
  func.func @transform_5(%arg0: i32) -> (i32, i32) {
    %c0_i32 = arith.constant 0 : i32
    %c0_i32_0 = arith.constant 0 : i32
    %c0_i32_1 = arith.constant 0 : i32
    return %c0_i32, %c0_i32_0 : i32, i32
  }
  func.func @transform_6(%arg0: i32) -> (i32, i32) {
    %c0_i32 = arith.constant 0 : i32
    %c0_i32_0 = arith.constant 0 : i32
    %c0_i32_1 = arith.constant 0 : i32
    return %c0_i32, %c0_i32_0 : i32, i32
  }
  func.func @transform_7(%arg0: i32) -> (i32, i32) {
    %c0_i32 = arith.constant 0 : i32
    %c0_i32_0 = arith.constant 0 : i32
    return %arg0, %c0_i32 : i32, i32
  }
}

</mosaic_0001>

<llo_original>
// kernel: tpu_custom_call.1
$region0: #{tpu_custom_call.1}
  #allocation0 [shape = 'u32[]', space=smem, size = 0x4, offset = 0x4, fixed_abs, tag = 'smem constant byte address 0x4 - core index']
  #allocation1 [shape = 'u32[72,128]{1,0:T(1,128)}', space=vmem, size = 0x9000, scoped, tag = 'internal scratch']
  %s0 = inlined_call_operand.vmem [shape: f32[8,8], index: 0, kind: input, shape index: {}]
  %s1 = inlined_call_operand.vmem [shape: f32[8,128], index: 1, kind: input, shape index: {}]
  %s2 = inlined_call_operand.vmem [shape: f32[1,128], index: 2, kind: input, shape index: {}]
  %s3 = inlined_call_operand.vmem [shape: bf16[128,64], index: 3, kind: input, shape index: {}]
  %s4 = inlined_call_operand.vmem [shape: f32[1,64], index: 4, kind: input, shape index: {}]
  %s5 = inlined_call_operand.vmem [shape: bf16[64,128], index: 5, kind: input, shape index: {}]
  %s6 = inlined_call_operand.vmem [shape: f32[1,128], index: 6, kind: input, shape index: {}]
  %s7 = inlined_call_operand.hbm [shape: f32[8,128], index: 7, kind: output, shape index: {}]
  %s8 = sld [smem:[#allocation0]]
  $region38: #{tpu_custom_call.1} parent=0
    _
  %s10 = ssub.s32 1, %s8
  %s11 = scalar_select 0, %s10, %s8
  $region1: #{tpu_custom_call.1} parent=0
    #allocation2 [shape = 'u8[4096]{0}', space=vmem, size = 0x1000, scoped, tag = 'output window, operand 0, single buffered']
    #allocation3 [shape = 's32[1]{0}', space=sflag, size = 0x4, scoped, tag = 'scoped memory for tpu_custom_call.1']
    %12 = vsyncpa [#allocation3], 0
    // Predicated region
    $region2: #{tpu_custom_call.1} parent=1 // pred_check
      _
    $region3: #{tpu_custom_call.1} parent=1 // pred_check_branch
      %14 = sbr.rel (0) target = $region5
    $region4: #{tpu_custom_call.1} parent=1 // pred_region
      _
    $region5: #{tpu_custom_call.1} parent=1 // pred_fallthru
      _
    // Predicated region
    $region6: #{tpu_custom_call.1} parent=1 // pred_check
      _
    $region7: #{tpu_custom_call.1} parent=1 // pred_check_branch
      %16 = sbr.rel (0) target = $region9
    $region8: #{tpu_custom_call.1} parent=1 // pred_region
      _
    $region9: #{tpu_custom_call.1} parent=1 // pred_fallthru
      _
    // Predicated region
    $region10: #{tpu_custom_call.1} parent=1 // pred_check
      _
    $region11: #{tpu_custom_call.1} parent=1 // pred_check_branch
      %18 = sbr.rel (0) target = $region13
    $region12: #{tpu_custom_call.1} parent=1 // pred_region
      _
    $region13: #{tpu_custom_call.1} parent=1 // pred_fallthru
      _
    // Predicated region
    $region14: #{tpu_custom_call.1} parent=1 // pred_check
      _
    $region15: #{tpu_custom_call.1} parent=1 // pred_check_branch
      %20 = sbr.rel (0) target = $region17
    $region16: #{tpu_custom_call.1} parent=1 // pred_region
      _
    $region17: #{tpu_custom_call.1} parent=1 // pred_fallthru
      _
    // Predicated region
    $region18: #{tpu_custom_call.1} parent=1 // pred_check
      _
    $region19: #{tpu_custom_call.1} parent=1 // pred_check_branch
      %22 = sbr.rel (0) target = $region21
    $region20: #{tpu_custom_call.1} parent=1 // pred_region
      _
    $region21: #{tpu_custom_call.1} parent=1 // pred_fallthru
      _
    // Predicated region
    $region22: #{tpu_custom_call.1} parent=1 // pred_check
      _
    $region23: #{tpu_custom_call.1} parent=1 // pred_check_branch
      %24 = sbr.rel (0) target = $region25
    $region24: #{tpu_custom_call.1} parent=1 // pred_region
      _
    $region25: #{tpu_custom_call.1} parent=1 // pred_fallthru
      _
    // Predicated region
    $region26: #{tpu_custom_call.1} parent=1 // pred_check
      _
    $region27: #{tpu_custom_call.1} parent=1 // pred_check_branch
      %26 = sbr.rel (0) target = $region29
    $region28: #{tpu_custom_call.1} parent=1 // pred_region
      _
    $region29: #{tpu_custom_call.1} parent=1 // pred_fallthru
      _
    %v28 = vld [vmem:[%s0] sm:$0xff]
    %v29 = vld [vmem:[%s1] sm:$0xff]
    %v30 = vld [vmem:[%s2] sm:$0x1]
    %v32 = vperm.slane %v30, 0
    %35 = vset.pattern.permute.xlu0 0
    %36 = vperm.xlu0 %35, %v28
    %v37 = vpop.permute.xlu0 %36
    %v39 = vperm.slane %v29, 0
    %v40 = vmul.f32 %v37, %v39
    %v41 = vadd.f32 %v32, %v40
    %42 = vset.pattern.permute.xlu0 1
    %43 = vperm.xlu0 %42, %v28
    %v44 = vpop.permute.xlu0 %43
    %v46 = vperm.slane %v29, 1
    %v47 = vmul.f32 %v44, %v46
    %v48 = vadd.f32 %v41, %v47
    %49 = vset.pattern.permute.xlu0 2
    %50 = vperm.xlu0 %49, %v28
    %v51 = vpop.permute.xlu0 %50
    %v53 = vperm.slane %v29, 2
    %v54 = vmul.f32 %v51, %v53
    %v55 = vadd.f32 %v48, %v54
    %56 = vset.pattern.permute.xlu0 3
    %57 = vperm.xlu0 %56, %v28
    %v58 = vpop.permute.xlu0 %57
    %v60 = vperm.slane %v29, 3
    %v61 = vmul.f32 %v58, %v60
    %v62 = vadd.f32 %v55, %v61
    %63 = vset.pattern.permute.xlu0 4
    %64 = vperm.xlu0 %63, %v28
    %v65 = vpop.permute.xlu0 %64
    %v67 = vperm.slane %v29, 4
    %v68 = vmul.f32 %v65, %v67
    %v69 = vadd.f32 %v62, %v68
    %70 = vset.pattern.permute.xlu0 5
    %71 = vperm.xlu0 %70, %v28
    %v72 = vpop.permute.xlu0 %71
    %v74 = vperm.slane %v29, 5
    %v75 = vmul.f32 %v72, %v74
    %v76 = vadd.f32 %v69, %v75
    %77 = vset.pattern.permute.xlu0 6
    %78 = vperm.xlu0 %77, %v28
    %v79 = vpop.permute.xlu0 %78
    %v81 = vperm.slane %v29, 6
    %v82 = vmul.f32 %v79, %v81
    %v83 = vadd.f32 %v76, %v82
    %84 = vset.pattern.permute.xlu0 7
    %85 = vperm.xlu0 %84, %v28
    %v86 = vpop.permute.xlu0 %85
    %v88 = vperm.slane %v29, 7
    %v89 = vmul.f32 %v86, %v88
    %v90 = vadd.f32 %v83, %v89
    %v91 = vmax.f32 %v90, 0.0
    %v92 = vpack.c.bf16 %v91, %v91
    %v93 = vld [vmem:[%s3] sm:$0xf]
    %v94 = vld [vmem:[%s3 + $0x4] sm:$0xf]
    %v95 = vld [vmem:[%s3 + $0x8] sm:$0xf]
    %v96 = vld [vmem:[%s3 + $0xc] sm:$0xf]
    %v97 = vld [vmem:[%s3 + $0x10] sm:$0xf]
    %v98 = vld [vmem:[%s3 + $0x14] sm:$0xf]
    %v99 = vld [vmem:[%s3 + $0x18] sm:$0xf]
    %v100 = vld [vmem:[%s3 + $0x1c] sm:$0xf]
    %v101 = vld [vmem:[%s3 + $0x20] sm:$0xf]
    %v102 = vld [vmem:[%s3 + $0x24] sm:$0xf]
    %v103 = vld [vmem:[%s3 + $0x28] sm:$0xf]
    %v104 = vld [vmem:[%s3 + $0x2c] sm:$0xf]
    %v105 = vld [vmem:[%s3 + $0x30] sm:$0xf]
    %v106 = vld [vmem:[%s3 + $0x34] sm:$0xf]
    %v107 = vld [vmem:[%s3 + $0x38] sm:$0xf]
    %v108 = vld [vmem:[%s3 + $0x3c] sm:$0xf]
    %v109 = vld [vmem:[%s4] sm:$0x1]
    %v111 = vperm.slane %v109, 0
    %v129 = vunpack.c.l.b16 %v93
    %v130 = vunpack.c.l.b16 %v94
    %v131 = vunpack.c.l.b16 %v95
    %v132 = vunpack.c.l.b16 %v96
    %v133 = vunpack.c.l.b16 %v97
    %v134 = vunpack.c.l.b16 %v98
    %v135 = vunpack.c.l.b16 %v99
    %v136 = vunpack.c.l.b16 %v100
    %v137 = vunpack.c.l.b16 %v101
    %v138 = vunpack.c.l.b16 %v102
    %v139 = vunpack.c.l.b16 %v103
    %v140 = vunpack.c.l.b16 %v104
    %v141 = vunpack.c.l.b16 %v105
    %v142 = vunpack.c.l.b16 %v106
    %v143 = vunpack.c.l.b16 %v107
    %v144 = vunpack.c.l.b16 %v108
    %v145 = vpack.c.b16 %v130, %v129
    %v146 = vpack.c.b16 %v132, %v131
    %v147 = vpack.c.b16 %v134, %v133
    %v148 = vpack.c.b16 %v136, %v135
    %v149 = vpack.c.b16 %v138, %v137
    %v150 = vpack.c.b16 %v140, %v139
    %v151 = vpack.c.b16 %v142, %v141
    %v152 = vpack.c.b16 %v144, %v143
    %161 = vmatpush.bf16.msra.mxu0 %v152
    %162 = vmatpush.bf16.msra.mxu0 %v151
    %163 = vmatpush.bf16.msra.mxu0 %v150
    %164 = vmatpush.bf16.msra.mxu0 %v149
    %165 = vmatpush.bf16.msra.mxu0 %v148
    %166 = vmatpush.bf16.msra.mxu0 %v147
    %167 = vmatpush.bf16.msra.mxu0 %v146
    %168 = vmatpush.bf16.msra.mxu0 %v145
    %169 = vmatmul.bf16.gmra.mxu0 %v92
    %v170 = vpop.f32.mrf.mxu0
    %v171 = vadd.f32 %v111, %v170
    %v172 = vpop.f32.mrf.mxu0
    %173 = vdwg.mxu0
    %v174 = vmax.f32 %v171, 0.0
    %v175 = vpack.c.bf16 %v174, %v174
    %v176 = vld [vmem:[%s5] sm:$0xf]
    %v177 = vld [vmem:[%s5 + $0x4] sm:$0xf]
    %v178 = vld [vmem:[%s5 + $0x8] sm:$0xf]
    %v179 = vld [vmem:[%s5 + $0xc] sm:$0xf]
    %v180 = vld [vmem:[%s5 + $0x10] sm:$0xf]
    %v181 = vld [vmem:[%s5 + $0x14] sm:$0xf]
    %v182 = vld [vmem:[%s5 + $0x18] sm:$0xf]
    %v183 = vld [vmem:[%s5 + $0x1c] sm:$0xf]
    %v184 = vld [vmem:[%s6] sm:$0x1]
    %v186 = vperm.slane %v184, 0
    %v196 = vunpack.c.l.b16 %v176
    %v197 = vunpack.c.l.b16 %v177
    %v198 = vunpack.c.l.b16 %v178
    %v199 = vunpack.c.l.b16 %v179
    %v200 = vunpack.c.l.b16 %v180
    %v201 = vunpack.c.l.b16 %v181
    %v202 = vunpack.c.l.b16 %v182
    %v203 = vunpack.c.l.b16 %v183
    %v204 = vpack.c.b16 %v197, %v196
    %v205 = vpack.c.b16 %v199, %v198
    %v206 = vpack.c.b16 %v201, %v200
    %v207 = vpack.c.b16 %v203, %v202
    %vm212 = vcmask 523264
    %v214 = vsel %vm212, %v175, 0
    %216 = vmatpush.bf16.msra.mxu0 0
    %217 = vmatpush.bf16.msra.mxu0 0
    %218 = vmatpush.bf16.msra.mxu0 0
    %219 = vmatpush.bf16.msra.mxu0 0
    %220 = vmatpush.bf16.msra.mxu0 %v207
    %221 = vmatpush.bf16.msra.mxu0 %v206
    %222 = vmatpush.bf16.msra.mxu0 %v205
    %223 = vmatpush.bf16.msra.mxu0 %v204
    %224 = vmatmul.bf16.gmra.mxu0 %v214
    %v225 = vpop.f32.mrf.mxu0
    %v226 = vadd.f32 %v186, %v225
    %v227 = vpop.f32.mrf.mxu0
    %228 = vdwg.mxu0
    %229 = vst [vmem:[#allocation2] sm:$0xff] %v226
    // Predicated region
    $region30: #{tpu_custom_call.1} parent=1 // pred_check
      _
    $region31: #{tpu_custom_call.1} parent=1 // pred_check_branch
      %231 = sbr.rel (0) target = $region33
    $region32: #{tpu_custom_call.1} parent=1 // pred_region
      %233 = vsyncadd [#allocation3], 0
      %s235 = sshll.u32 [#allocation2], 4
      %s236 = int_to_ptr.vmem [resolvable:$true] %s235
      %s237 = sshll.u32 %s7, 4
      %s238 = int_to_ptr.hbm [resolvable:$true] %s237
      %240 = dma.vmem_to_hbm [thread:$0]  %s236, 128, %s238, [#allocation3]
    $region33: #{tpu_custom_call.1} parent=1 // pred_fallthru
      _
    // Predicated region
    $region34: #{tpu_custom_call.1} parent=1 // pred_check
      _
    $region35: #{tpu_custom_call.1} parent=1 // pred_check_branch
      %242 = sbr.rel (0) target = $region37
    $region36: #{tpu_custom_call.1} parent=1 // pred_region
      %244 = dma.done [#allocation3], 128
    $region37: #{tpu_custom_call.1} parent=1 // pred_fallthru
      _
    %245 = vsyncpa [#allocation3], 1

</llo_original>
